<compile_context>
chip_gen: v5e
topology: v5e:2x2
jax: 0.10.0
libtpu: 0.0.40
codegen_flags: <defaults>
</compile_context>

<pallas_src>
import functools

import jax
import jax.numpy as jnp
from jax import lax
from jax.experimental import pallas as pl
from jax.experimental.pallas import tpu as pltpu


def _round_up(x: int, m: int) -> int:
    return (x + m - 1) // m * m


def _vmem_capacity_bytes() -> int:
    """Physical VMEM of the current TPU generation (conservative fallback)."""
    try:
        info = pltpu.get_tpu_info()
        cap = getattr(info, "vmem_capacity_bytes", None)
        if cap:
            return int(cap)
    except Exception:
        pass
    return 64 * 1024 * 1024  # v7x per-core VMEM (smallest of v5e/v6e/v7x)


def _pick_block_tokens(T: int, Hq: int, Hk: int, hs: int, rotary_dim: int,
                       itemsize: int, requested: int, vmem_cap: int) -> int:
    """Token-block size: as large as a ~half-VMEM budget allows, multiple of 8,
    and small enough that the grid has >=2 blocks when there is enough work."""
    hq_p = _round_up(Hq, 8)          # sublane padding of the head dim
    hk_p = _round_up(Hk, 8)
    budget = vmem_cap // 2
    # Per-token VMEM bytes: double-buffered in+out windows in the storage
    # dtype (x2 buffers x2 in/out) plus ~4 live f32 rotary-width temporaries.
    per_tok = (hq_p + hk_p) * (hs * itemsize * 4 + rotary_dim * 4 * 4)
    tb = min(requested, max(1, budget // per_tok))
    tb = max(8, tb // 8 * 8)
    # >=2 grid blocks whenever possible so both v7x TensorCores get a share.
    tb = min(tb, max(8, _round_up(pl.cdiv(T, 2), 8)))
    return tb


def _rope_kernel(cos_ref, sin_ref, q_ref, k_ref, qo_ref, ko_ref, *,
                 rotary_dim: int, head_size: int, is_neox_style: bool,
                 use_roll: bool):
    """One token-block of RoPE applied to q and k.

    cos_ref / sin_ref: (tb, W) where
      * neox slice path : W = rotary_dim // 2, plain cos / sin
      * neox roll path  : W = rotary_dim, cos = [cos, cos], sin = [-sin, sin]
      * gpt-j path      : W = rotary_dim, interleaved cos; sin carries -,+ sign
    q/k and outputs: (tb, H, head_size) in the storage dtype.
    """
    f32 = jnp.float32
    half = rotary_dim // 2
    cos = cos_ref[...].astype(f32)[:, None, :]   # (tb, 1, W) — broadcast heads
    sin = sin_ref[...].astype(f32)[:, None, :]

    def apply(x_ref, o_ref):
        # Upcast only the rotary lanes; the tail never leaves its dtype.
        x_rot = x_ref[..., :rotary_dim].astype(f32)          # (tb, H, rd)

        if is_neox_style and not use_roll:
            # Two half-width ref-slice stores — no concat temporaries.
            x1 = x_rot[..., :half]
            x2 = x_rot[..., half:]
            o_ref[..., :half] = (x1 * cos - x2 * sin).astype(o_ref.dtype)
            o_ref[..., half:rotary_dim] = (x2 * cos + x1 * sin).astype(o_ref.dtype)
        else:
            if use_roll:
                # neox, rd % 128 == 0: XLU roll gives [x2, x1]; sign is baked
                # into sin = [-sin, sin]; one contiguous lane-dense store.
                partner = pltpu.roll(x_rot, shift=half, axis=-1)
            else:
                # gpt-j: partner[l] = x[l ^ 1]; sign baked into sin (-,+).
                lane = lax.broadcasted_iota(jnp.int32, x_rot.shape,
                                            x_rot.ndim - 1)
                partner = jnp.where(lane % 2 == 0,
                                    jnp.roll(x_rot, -1, axis=-1),
                                    jnp.roll(x_rot, 1, axis=-1))
            out = (x_rot * cos + partner * sin).astype(o_ref.dtype)
            if rotary_dim == head_size:
                o_ref[...] = out
            else:
                o_ref[..., :rotary_dim] = out

        if rotary_dim < head_size:
            # Pass-through tail, storage dtype, no f32 round trip.
            o_ref[..., rotary_dim:] = x_ref[..., rotary_dim:]

    apply(q_ref, qo_ref)
    apply(k_ref, ko_ref)


def _rope_pallas(cos, sin, q3, k3, *, rotary_dim: int, head_size: int,
                 is_neox_style: bool, use_roll: bool, block_tokens: int):
    T, Hq, hs = q3.shape
    _, Hk, _ = k3.shape
    W = cos.shape[-1]

    vmem_cap = _vmem_capacity_bytes()
    itemsize = max(jnp.dtype(q3.dtype).itemsize, jnp.dtype(k3.dtype).itemsize)
    tb = _pick_block_tokens(T, Hq, Hk, hs, rotary_dim, itemsize,
                            block_tokens, vmem_cap)
    grid = (pl.cdiv(T, tb),)                     # ragged last block is masked
    vmem_limit = min(vmem_cap * 3 // 4, 112 * 1024 * 1024)

    kernel = functools.partial(_rope_kernel, rotary_dim=rotary_dim,
                               head_size=head_size,
                               is_neox_style=is_neox_style, use_roll=use_roll)

    qo, ko = pl.pallas_call(
        kernel,
        out_shape=(jax.ShapeDtypeStruct((T, Hq, hs), q3.dtype),
                   jax.ShapeDtypeStruct((T, Hk, hs), k3.dtype)),
        grid=grid,
        in_specs=[
            pl.BlockSpec((tb, W), lambda i: (i, 0)),        # cos
            pl.BlockSpec((tb, W), lambda i: (i, 0)),        # sin
            pl.BlockSpec((tb, Hq, hs), lambda i: (i, 0, 0)),  # q
            pl.BlockSpec((tb, Hk, hs), lambda i: (i, 0, 0)),  # k
        ],
        out_specs=(
            pl.BlockSpec((tb, Hq, hs), lambda i: (i, 0, 0)),
            pl.BlockSpec((tb, Hk, hs), lambda i: (i, 0, 0)),
        ),
        compiler_params=pltpu.CompilerParams(
            dimension_semantics=("parallel",),
            vmem_limit_bytes=int(vmem_limit),
        ),
    )(cos, sin, q3, k3)
    return qo, ko


class RotaryEmbedding:
    """JAX/Pallas port of the vLLM RotaryEmbedding module (forward pass)."""

    def __init__(self, head_size: int, rotary_dim: int,
                 max_position_embeddings: int, base: float,
                 is_neox_style: bool, dtype=jnp.float32):
        assert rotary_dim % 2 == 0
        self.head_size = head_size
        self.rotary_dim = rotary_dim
        self.max_position_embeddings = max_position_embeddings
        self.base = base
        self.is_neox_style = is_neox_style
        self.dtype = dtype

        inv_freq = 1.0 / (base ** (jnp.arange(0, rotary_dim, 2,
                                              dtype=jnp.float32) / rotary_dim))
        t = jnp.arange(max_position_embeddings, dtype=jnp.float32)
        freqs = jnp.einsum("i,j->ij", t, inv_freq)
        cos_f32, sin_f32 = jnp.cos(freqs), jnp.sin(freqs)
        # Separate caches in the serving dtype: no per-call full-cache cast
        # and no post-gather split.
        self.cos_cache = cos_f32.astype(dtype)            # (max_pos, rd/2)
        self.sin_cache = sin_f32.astype(dtype)            # (max_pos, rd/2)
        # Combined cache kept only for parity with the torch module / ref.
        self.cos_sin_cache = jnp.concatenate(
            [cos_f32, sin_f32], axis=-1).astype(dtype)    # (max_pos, rd)

    def __call__(self, positions, query, key, offsets=None, *,
                 block_tokens: int = 512):
        q_shape, k_shape = query.shape, key.shape
        T = 1
        for s in q_shape[:-1]:
            T *= s
        Hq = q_shape[-1] // self.head_size
        Hk = k_shape[-1] // self.head_size
        rd, half = self.rotary_dim, self.rotary_dim // 2

        pos = positions.reshape(T).astype(jnp.int32)
        if offsets is not None:
            pos = pos + offsets.reshape(T).astype(jnp.int32)

        # Per-token cos/sin gather (tiny; stays in plain JAX — see TODO above).
        cos = jnp.take(self.cos_cache, pos, axis=0)       # (T, rd/2)
        sin = jnp.take(self.sin_cache, pos, axis=0)

        use_roll = self.is_neox_style and (rd % 128 == 0)
        if self.is_neox_style:
            if use_roll:
                cos_in = jnp.concatenate([cos, cos], axis=-1)      # (T, rd)
                sin_in = jnp.concatenate([-sin, sin], axis=-1)     # sign baked
            else:
                cos_in, sin_in = cos, sin                          # (T, rd/2)
        else:
            # gpt-j: interleave to full width; sign baked into sin (-,+).
            cos_in = jnp.stack([cos, cos], axis=-1).reshape(T, rd)
            sin_in = jnp.stack([-sin, sin], axis=-1).reshape(T, rd)

        q3 = query.reshape(T, Hq, self.head_size)
        k3 = key.reshape(T, Hk, self.head_size)

        qo, ko = _rope_pallas(cos_in, sin_in, q3, k3,
                              rotary_dim=rd, head_size=self.head_size,
                              is_neox_style=self.is_neox_style,
                              use_roll=use_roll, block_tokens=block_tokens)
        # Outputs keep the query/key dtype (matches the in-place vLLM kernel).
        return qo.reshape(q_shape), ko.reshape(k_shape)


# ----------------------------- reference (plain JAX) ------------------------

def _rope_ref(cache, positions, query, key, *, head_size, rotary_dim,
              is_neox_style):
    q = query.reshape(query.shape[:-1] + (-1, head_size))
    k = key.reshape(key.shape[:-1] + (-1, head_size))
    q_rot, q_pass = q[..., :rotary_dim], q[..., rotary_dim:]
    k_rot, k_pass = k[..., :rotary_dim], k[..., rotary_dim:]

    cos_sin = cache.astype(query.dtype)[positions]        # pos_shape + (rd,)
    cos, sin = jnp.split(cos_sin, 2, axis=-1)
    if is_neox_style:
        cos = jnp.concatenate([cos, cos], axis=-1)[..., None, :]
        sin = jnp.concatenate([sin, sin], axis=-1)[..., None, :]

        def rotate(x):
            x1, x2 = jnp.split(x, 2, axis=-1)
            return jnp.concatenate([-x2, x1], axis=-1)
    else:
        cos = jnp.repeat(cos, 2, axis=-1)[..., None, :]
        sin = jnp.repeat(sin, 2, axis=-1)[..., None, :]

        def rotate(x):
            x1, x2 = x[..., ::2], x[..., 1::2]
            return jnp.stack([-x2, x1], axis=-1).reshape(x.shape)

    f32 = jnp.float32
    q_rot = (q_rot.astype(f32) * cos.astype(f32)
             + rotate(q_rot).astype(f32) * sin.astype(f32)).astype(query.dtype)
    k_rot = (k_rot.astype(f32) * cos.astype(f32)
             + rotate(k_rot).astype(f32) * sin.astype(f32)).astype(key.dtype)

    q = jnp.concatenate([q_rot, q_pass], axis=-1).reshape(query.shape)
    k = jnp.concatenate([k_rot, k_pass], axis=-1).reshape(key.shape)
    return q, k


if __name__ == "__main__":
    root = jax.random.PRNGKey(0)
    kp1, kq, kk, kp2, kp3, ko3, kq3, kk3 = jax.random.split(root, 8)

    batch, seq = 2, 8
    head_size = 32
    num_q_heads, num_kv_heads = 4, 2
    max_pos, base = 64, 10000

    query = jax.random.normal(kq, (batch, seq, num_q_heads * head_size),
                              dtype=jnp.float32)
    key_ = jax.random.normal(kk, (batch, seq, num_kv_heads * head_size),
                             dtype=jnp.float32)

    # --- test 1: neox, full rotary ---------------------------------------
    rope = RotaryEmbedding(head_size, head_size, max_pos, base,
                           is_neox_style=True, dtype=jnp.float32)
    positions = jax.random.randint(kp1, (batch, seq), 0, max_pos)
    q_out, k_out = rope(positions, query, key_)
    q_out = jax.block_until_ready(q_out)
    k_out = jax.block_until_ready(k_out)
    q_ref, k_ref = _rope_ref(rope.cos_sin_cache, positions, query, key_,
                             head_size=head_size, rotary_dim=head_size,
                             is_neox_style=True)
    assert q_out.shape == query.shape and q_out.dtype == query.dtype
    assert k_out.shape == key_.shape and k_out.dtype == key_.dtype
    assert bool(jnp.allclose(q_out, q_ref, atol=1e-5, rtol=1e-5))
    assert bool(jnp.allclose(k_out, k_ref, atol=1e-5, rtol=1e-5))

    # --- test 2: neox, partial rotary (rotary_dim < head_size) -----------
    rotary_dim2 = 16
    rope2 = RotaryEmbedding(head_size, rotary_dim2, max_pos, base,
                            is_neox_style=True, dtype=jnp.float32)
    positions2 = jax.random.randint(kp2, (batch, seq), 0, max_pos)
    q_out2, k_out2 = rope2(positions2, query, key_)
    q_out2 = jax.block_until_ready(q_out2)
    k_out2 = jax.block_until_ready(k_out2)
    q_ref2, k_ref2 = _rope_ref(rope2.cos_sin_cache, positions2, query, key_,
                               head_size=head_size, rotary_dim=rotary_dim2,
                               is_neox_style=True)
    assert bool(jnp.allclose(q_out2, q_ref2, atol=1e-5, rtol=1e-5))
    assert bool(jnp.allclose(k_out2, k_ref2, atol=1e-5, rtol=1e-5))

    # --- test 3: gpt-j, full rotary, ragged token count, 1D pos + offsets -
    T3 = 12
    rope3 = RotaryEmbedding(head_size, head_size, max_pos, base,
                            is_neox_style=False, dtype=jnp.float32)
    positions3 = jax.random.randint(kp3, (T3,), 0, max_pos // 2)
    offsets3 = jax.random.randint(ko3, (T3,), 0, max_pos // 2)
    query3 = jax.random.normal(kq3, (T3, num_q_heads * head_size),
                               dtype=jnp.float32)
    key3 = jax.random.normal(kk3, (T3, num_kv_heads * head_size),
                             dtype=jnp.float32)
    q_out3, k_out3 = rope3(positions3, query3, key3, offsets=offsets3)
    q_out3 = jax.block_until_ready(q_out3)
    k_out3 = jax.block_until_ready(k_out3)
    q_ref3, k_ref3 = _rope_ref(rope3.cos_sin_cache, positions3 + offsets3,
                               query3, key3, head_size=head_size,
                               rotary_dim=head_size, is_neox_style=False)
    assert bool(jnp.allclose(q_out3, q_ref3, atol=1e-5, rtol=1e-5))
    assert bool(jnp.allclose(k_out3, k_ref3, atol=1e-5, rtol=1e-5))

    print("KERNEL_OK")
</pallas_src>

<mosaic_0001>
module attributes {stable_mosaic.version = 11 : i64} {
  func.func @_rope_kernel(%arg0: i32, %arg1: memref<8x16xf32, #tpu.memory_space<vmem>>, %arg2: memref<8x16xf32, #tpu.memory_space<vmem>>, %arg3: memref<8x4x32xf32, #tpu.memory_space<vmem>>, %arg4: memref<8x2x32xf32, #tpu.memory_space<vmem>>, %arg5: memref<8x4x32xf32, #tpu.memory_space<vmem>>, %arg6: memref<8x2x32xf32, #tpu.memory_space<vmem>>) attributes {dimension_semantics = [#tpu.dimension_semantics<parallel>], iteration_bounds = array<i64: 2>, scalar_prefetch = 0 : i64, scratch_operands = 0 : i64, tpu.core_type = #tpu.core_type<tc>, window_params = [{transform_indices = @transform_0, window_bounds = array<i64: 8, 16>}, {transform_indices = @transform_1, window_bounds = array<i64: 8, 16>}, {transform_indices = @transform_2, window_bounds = array<i64: 8, 4, 32>}, {transform_indices = @transform_3, window_bounds = array<i64: 8, 2, 32>}, {transform_indices = @transform_4, window_bounds = array<i64: 8, 4, 32>}, {transform_indices = @transform_5, window_bounds = array<i64: 8, 2, 32>}]} {
    %c0 = arith.constant 0 : index
    %c0_0 = arith.constant 0 : index
    %0 = vector.load %arg1[%c0, %c0_0] : memref<8x16xf32, #tpu.memory_space<vmem>>, vector<8x16xf32>
    %1 = vector.shape_cast %0 : vector<8x16xf32> to vector<8x1x16xf32>
    %c0_1 = arith.constant 0 : index
    %c0_2 = arith.constant 0 : index
    %2 = vector.load %arg2[%c0_1, %c0_2] : memref<8x16xf32, #tpu.memory_space<vmem>>, vector<8x16xf32>
    %3 = vector.shape_cast %2 : vector<8x16xf32> to vector<8x1x16xf32>
    %c0_3 = arith.constant 0 : index
    %c0_4 = arith.constant 0 : index
    %c0_5 = arith.constant 0 : index
    %4 = vector.load %arg3[%c0_3, %c0_4, %c0_5] : memref<8x4x32xf32, #tpu.memory_space<vmem>>, vector<8x4x32xf32>
    %5 = vector.extract_strided_slice %4 {offsets = [0, 0, 0], sizes = [8, 4, 16], strides = [1, 1, 1]} : vector<8x4x32xf32> to vector<8x4x16xf32>
    %6 = vector.extract_strided_slice %4 {offsets = [0, 0, 16], sizes = [8, 4, 16], strides = [1, 1, 1]} : vector<8x4x32xf32> to vector<8x4x16xf32>
    %7 = vector.broadcast %1 : vector<8x1x16xf32> to vector<8x4x16xf32>
    %8 = arith.mulf %5, %7 : vector<8x4x16xf32>
    %9 = vector.broadcast %3 : vector<8x1x16xf32> to vector<8x4x16xf32>
    %10 = arith.mulf %6, %9 : vector<8x4x16xf32>
    %11 = arith.subf %8, %10 : vector<8x4x16xf32>
    %c0_6 = arith.constant 0 : index
    %c0_7 = arith.constant 0 : index
    %c0_8 = arith.constant 0 : index
    %12 = vector.load %arg5[%c0_6, %c0_7, %c0_8] : memref<8x4x32xf32, #tpu.memory_space<vmem>>, vector<8x4x16xf32>
    tpu.vector_store %arg5[%c0_6, %c0_7, %c0_8], %11 {strides = array<i32>} : memref<8x4x32xf32, #tpu.memory_space<vmem>>, vector<8x4x16xf32>,
    %13 = vector.broadcast %1 : vector<8x1x16xf32> to vector<8x4x16xf32>
    %14 = arith.mulf %6, %13 : vector<8x4x16xf32>
    %15 = vector.broadcast %3 : vector<8x1x16xf32> to vector<8x4x16xf32>
    %16 = arith.mulf %5, %15 : vector<8x4x16xf32>
    %17 = arith.addf %14, %16 : vector<8x4x16xf32>
    %c0_9 = arith.constant 0 : index
    %c0_10 = arith.constant 0 : index
    %c16 = arith.constant 16 : index
    %18 = vector.load %arg5[%c0_9, %c0_10, %c16] : memref<8x4x32xf32, #tpu.memory_space<vmem>>, vector<8x4x16xf32>
    tpu.vector_store %arg5[%c0_9, %c0_10, %c16], %17 {strides = array<i32>} : memref<8x4x32xf32, #tpu.memory_space<vmem>>, vector<8x4x16xf32>,
    %c0_11 = arith.constant 0 : index
    %c0_12 = arith.constant 0 : index
    %c0_13 = arith.constant 0 : index
    %19 = vector.load %arg4[%c0_11, %c0_12, %c0_13] : memref<8x2x32xf32, #tpu.memory_space<vmem>>, vector<8x2x32xf32>
    %20 = vector.extract_strided_slice %19 {offsets = [0, 0, 0], sizes = [8, 2, 16], strides = [1, 1, 1]} : vector<8x2x32xf32> to vector<8x2x16xf32>
    %21 = vector.extract_strided_slice %19 {offsets = [0, 0, 16], sizes = [8, 2, 16], strides = [1, 1, 1]} : vector<8x2x32xf32> to vector<8x2x16xf32>
    %22 = vector.broadcast %1 : vector<8x1x16xf32> to vector<8x2x16xf32>
    %23 = arith.mulf %20, %22 : vector<8x2x16xf32>
    %24 = vector.broadcast %3 : vector<8x1x16xf32> to vector<8x2x16xf32>
    %25 = arith.mulf %21, %24 : vector<8x2x16xf32>
    %26 = arith.subf %23, %25 : vector<8x2x16xf32>
    %c0_14 = arith.constant 0 : index
    %c0_15 = arith.constant 0 : index
    %c0_16 = arith.constant 0 : index
    %27 = vector.load %arg6[%c0_14, %c0_15, %c0_16] : memref<8x2x32xf32, #tpu.memory_space<vmem>>, vector<8x2x16xf32>
    tpu.vector_store %arg6[%c0_14, %c0_15, %c0_16], %26 {strides = array<i32>} : memref<8x2x32xf32, #tpu.memory_space<vmem>>, vector<8x2x16xf32>,
    %28 = vector.broadcast %1 : vector<8x1x16xf32> to vector<8x2x16xf32>
    %29 = arith.mulf %21, %28 : vector<8x2x16xf32>
    %30 = vector.broadcast %3 : vector<8x1x16xf32> to vector<8x2x16xf32>
    %31 = arith.mulf %20, %30 : vector<8x2x16xf32>
    %32 = arith.addf %29, %31 : vector<8x2x16xf32>
    %c0_17 = arith.constant 0 : index
    %c0_18 = arith.constant 0 : index
    %c16_19 = arith.constant 16 : index
    %33 = vector.load %arg6[%c0_17, %c0_18, %c16_19] : memref<8x2x32xf32, #tpu.memory_space<vmem>>, vector<8x2x16xf32>
    tpu.vector_store %arg6[%c0_17, %c0_18, %c16_19], %32 {strides = array<i32>} : memref<8x2x32xf32, #tpu.memory_space<vmem>>, vector<8x2x16xf32>,
    return
  }
  func.func @transform_0(%arg0: i32) -> (i32, i32) {
    %c0_i32 = arith.constant 0 : i32
    %c0_i32_0 = arith.constant 0 : i32
    return %arg0, %c0_i32 : i32, i32
  }
  func.func @transform_1(%arg0: i32) -> (i32, i32) {
    %c0_i32 = arith.constant 0 : i32
    %c0_i32_0 = arith.constant 0 : i32
    return %arg0, %c0_i32 : i32, i32
  }
  func.func @transform_2(%arg0: i32) -> (i32, i32, i32) {
    %c0_i32 = arith.constant 0 : i32
    %c0_i32_0 = arith.constant 0 : i32
    %c0_i32_1 = arith.constant 0 : i32
    return %arg0, %c0_i32, %c0_i32_0 : i32, i32, i32
  }
  func.func @transform_3(%arg0: i32) -> (i32, i32, i32) {
    %c0_i32 = arith.constant 0 : i32
    %c0_i32_0 = arith.constant 0 : i32
    %c0_i32_1 = arith.constant 0 : i32
    return %arg0, %c0_i32, %c0_i32_0 : i32, i32, i32
  }
  func.func @transform_4(%arg0: i32) -> (i32, i32, i32) {
    %c0_i32 = arith.constant 0 : i32
    %c0_i32_0 = arith.constant 0 : i32
    %c0_i32_1 = arith.constant 0 : i32
    return %arg0, %c0_i32, %c0_i32_0 : i32, i32, i32
  }
  func.func @transform_5(%arg0: i32) -> (i32, i32, i32) {
    %c0_i32 = arith.constant 0 : i32
    %c0_i32_0 = arith.constant 0 : i32
    %c0_i32_1 = arith.constant 0 : i32
    return %arg0, %c0_i32, %c0_i32_0 : i32, i32, i32
  }
}

</mosaic_0001>

<llo_original>
// kernel: tpu_custom_call.1
$region0: #{tpu_custom_call.1}
  #allocation0 [shape = 'u32[]', space=smem, size = 0x4, offset = 0x4, fixed_abs, tag = 'smem constant byte address 0x4 - core index']
  #allocation1 [shape = 'u32[72,128]{1,0:T(1,128)}', space=vmem, size = 0x9000, scoped, tag = 'internal scratch']
  %s0 = inlined_call_operand.hbm [shape: f32[16,16], index: 0, kind: input, shape index: {}]
  %s1 = inlined_call_operand.hbm [shape: f32[16,16], index: 1, kind: input, shape index: {}]
  %s2 = inlined_call_operand.hbm [shape: f32[16,4,32], index: 2, kind: input, shape index: {}]
  %s3 = inlined_call_operand.hbm [shape: f32[16,2,32], index: 3, kind: input, shape index: {}]
  %s4 = inlined_call_operand.hbm [shape: f32[16,4,32], index: 4, kind: output, shape index: {0}]
  %s5 = inlined_call_operand.hbm [shape: f32[16,2,32], index: 5, kind: output, shape index: {1}]
  %6 = xla_tuple %s4, %s5
  %s7 = sld [smem:[#allocation0]]
  $region73: #{tpu_custom_call.1} parent=0
    _
  %s9 = ssub.s32 1, %s7
  %s10 = scalar_select 0, %s9, %s7
  $region1: #{tpu_custom_call.1} parent=0
    #allocation2 [shape = 'u8[8192]{0}', space=vmem, size = 0x2000, scoped, tag = 'input window, operand 0']
    #allocation3 [shape = 's32[2]{0}', space=sflag, size = 0x8, scoped, tag = 'scoped memory for tpu_custom_call.1']
    #allocation4 [shape = 's32[2]{0}', space=sflag, size = 0x8, scoped, tag = 'scoped memory for tpu_custom_call.1']
    #allocation5 [shape = 'u8[8192]{0}', space=vmem, size = 0x2000, scoped, tag = 'input window, operand 1']
    #allocation6 [shape = 's32[2]{0}', space=sflag, size = 0x8, scoped, tag = 'scoped memory for tpu_custom_call.1']
    #allocation7 [shape = 'u8[32768]{0}', space=vmem, size = 0x8000, scoped, tag = 'input window, operand 2']
    #allocation8 [shape = 'u8[16384]{0}', space=vmem, size = 0x4000, scoped, tag = 'input window, operand 3']
    #allocation9 [shape = 's32[2]{0}', space=sflag, size = 0x8, scoped, tag = 'scoped memory for tpu_custom_call.1']
    #allocation10 [shape = 'u8[32768]{0}', space=vmem, size = 0x8000, scoped, tag = 'output window, operand 0']
    #allocation11 [shape = 'u8[16384]{0}', space=vmem, size = 0x4000, scoped, tag = 'output window, operand 1']
    #allocation12 [shape = 's32[2]{0}', space=sflag, size = 0x8, scoped, tag = 'scoped memory for tpu_custom_call.1']
    %11 = vsyncpa [#allocation3], 0
    %s12 = scalar_lea.sflag [#allocation3], 1
    %13 = vsyncpa %s12, 0
    %14 = vsyncpa [#allocation6], 0
    %s15 = scalar_lea.sflag [#allocation6], 1
    %16 = vsyncpa %s15, 0
    %17 = vsyncpa [#allocation9], 0
    %s18 = scalar_lea.sflag [#allocation9], 1
    %19 = vsyncpa %s18, 0
    %20 = vsyncpa [#allocation4], 0
    %s21 = scalar_lea.sflag [#allocation4], 1
    %22 = vsyncpa %s21, 0
    %23 = vsyncpa [#allocation12], 0
    %s24 = scalar_lea.sflag [#allocation12], 1
    %25 = vsyncpa %s24, 0
    loop: start=0, step=1, limit=4
    $region2: #{tpu_custom_call.1} parent=1 // loop_pre_header
      _
    $region3: #{tpu_custom_call.1} parent=1 // loop_header
      %s27 = sphi 0, %s31
      %p28 = scmp.ge.s32.totalorder %s27, 4
      %s37 = sphi 0, %s39
      %s40 = sphi 0, %s37
      %s41 = sphi 0, %s40
      %s57 = sphi 0, %s41
      %s63 = sphi 0, %s65
      %s66 = sphi 0, %s63
      %s67 = sphi 0, %s66
      %s83 = sphi 0, %s67
      %s89 = sphi 0, %s91
      %s92 = sphi 0, %s89
      %s93 = sphi 0, %s92
      %s109 = sphi 0, %s93
      %s115 = sphi 0, %s117
      %s118 = sphi 0, %s115
      %s119 = sphi 0, %s118
      %s135 = sphi 0, %s119
      %s141 = sphi 0, %s143
      %s144 = sphi 0, %s141
      %s145 = sphi 0, %s144
      %s161 = sphi 0, %s145
      %s167 = sphi 0, %s169
      %s170 = sphi 0, %s167
      %s171 = sphi 0, %s170
      %s187 = sphi 0, %s171
    $region4: #{tpu_custom_call.1} parent=1 // loop_header_branch
      %30 = sbr.rel (%p28) target = $region8
    $region5: #{tpu_custom_call.1} parent=1 // loop_body
      %s32 = ssub.s32 %s27, 1
      %s33 = ssub.s32 %s27, 2
      %s34 = sadd.s32 %s27, 1
      %s35 = ssub.s32 %s27, %s34
      %p36 = scmp.eq.s32.totalorder %s35, 0
      %s38 = sadd.s32 %s37, 1
      %s39 = scalar_select %p36, %s37, %s38
      %p42 = pneg %p36
      %p43 = scmp.eq.s32.totalorder %s27, 1
      %p44 = por %p42, %p43
      %p45 = scmp.ne.s32.totalorder %s37, %s40
      %p46 = scmp.eq.s32.totalorder %s27, 0
      %p47 = por %p45, %p46
      %p48 = scmp.ne.s32.totalorder %s37, %s40
      %p49 = scmp.eq.s32.totalorder %s32, 1
      %p50 = por %p48, %p49
      %p51 = scmp.ne.s32.totalorder %s40, %s41
      %p52 = scmp.eq.s32.totalorder %s32, 0
      %p53 = por %p51, %p52
      %p54 = scmp.ne.s32.totalorder %s40, %s41
      %p55 = scmp.eq.s32.totalorder %s33, 1
      %p56 = por %p54, %p55
      %p58 = scmp.ne.s32.totalorder %s41, %s57
      %p59 = scmp.eq.s32.totalorder %s33, 0
      %p60 = por %p58, %p59
      %s61 = ssub.s32 %s27, %s34
      %p62 = scmp.eq.s32.totalorder %s61, 0
      %s64 = sadd.s32 %s63, 1
      %s65 = scalar_select %p62, %s63, %s64
      %p68 = pneg %p62
      %p69 = scmp.eq.s32.totalorder %s27, 1
      %p70 = por %p68, %p69
      %p71 = scmp.ne.s32.totalorder %s63, %s66
      %p72 = scmp.eq.s32.totalorder %s27, 0
      %p73 = por %p71, %p72
      %p74 = scmp.ne.s32.totalorder %s63, %s66
      %p75 = scmp.eq.s32.totalorder %s32, 1
      %p76 = por %p74, %p75
      %p77 = scmp.ne.s32.totalorder %s66, %s67
      %p78 = scmp.eq.s32.totalorder %s32, 0
      %p79 = por %p77, %p78
      %p80 = scmp.ne.s32.totalorder %s66, %s67
      %p81 = scmp.eq.s32.totalorder %s33, 1
      %p82 = por %p80, %p81
      %p84 = scmp.ne.s32.totalorder %s67, %s83
      %p85 = scmp.eq.s32.totalorder %s33, 0
      %p86 = por %p84, %p85
      %s87 = ssub.s32 %s27, %s34
      %p88 = scmp.eq.s32.totalorder %s87, 0
      %s90 = sadd.s32 %s89, 1
      %s91 = scalar_select %p88, %s89, %s90
      %p94 = pneg %p88
      %p95 = scmp.eq.s32.totalorder %s27, 1
      %p96 = por %p94, %p95
      %p97 = scmp.ne.s32.totalorder %s89, %s92
      %p98 = scmp.eq.s32.totalorder %s27, 0
      %p99 = por %p97, %p98
      %p100 = scmp.ne.s32.totalorder %s89, %s92
      %p101 = scmp.eq.s32.totalorder %s32, 1
      %p102 = por %p100, %p101
      %p103 = scmp.ne.s32.totalorder %s92, %s93
      %p104 = scmp.eq.s32.totalorder %s32, 0
      %p105 = por %p103, %p104
      %p106 = scmp.ne.s32.totalorder %s92, %s93
      %p107 = scmp.eq.s32.totalorder %s33, 1
      %p108 = por %p106, %p107
      %p110 = scmp.ne.s32.totalorder %s93, %s109
      %p111 = scmp.eq.s32.totalorder %s33, 0
      %p112 = por %p110, %p111
      %s113 = ssub.s32 %s27, %s34
      %p114 = scmp.eq.s32.totalorder %s113, 0
      %s116 = sadd.s32 %s115, 1
      %s117 = scalar_select %p114, %s115, %s116
      %p120 = pneg %p114
      %p121 = scmp.eq.s32.totalorder %s27, 1
      %p122 = por %p120, %p121
      %p123 = scmp.ne.s32.totalorder %s115, %s118
      %p124 = scmp.eq.s32.totalorder %s27, 0
      %p125 = por %p123, %p124
      %p126 = scmp.ne.s32.totalorder %s115, %s118
      %p127 = scmp.eq.s32.totalorder %s32, 1
      %p128 = por %p126, %p127
      %p129 = scmp.ne.s32.totalorder %s118, %s119
      %p130 = scmp.eq.s32.totalorder %s32, 0
      %p131 = por %p129, %p130
      %p132 = scmp.ne.s32.totalorder %s118, %s119
      %p133 = scmp.eq.s32.totalorder %s33, 1
      %p134 = por %p132, %p133
      %p136 = scmp.ne.s32.totalorder %s119, %s135
      %p137 = scmp.eq.s32.totalorder %s33, 0
      %p138 = por %p136, %p137
      %s139 = ssub.s32 %s27, %s34
      %p140 = scmp.eq.s32.totalorder %s139, 0
      %s142 = sadd.s32 %s141, 1
      %s143 = scalar_select %p140, %s141, %s142
      %p146 = pneg %p140
      %p147 = scmp.eq.s32.totalorder %s27, 1
      %p148 = por %p146, %p147
      %p149 = scmp.ne.s32.totalorder %s141, %s144
      %p150 = scmp.eq.s32.totalorder %s27, 0
      %p151 = por %p149, %p150
      %p152 = scmp.ne.s32.totalorder %s141, %s144
      %p153 = scmp.eq.s32.totalorder %s32, 1
      %p154 = por %p152, %p153
      %p155 = scmp.ne.s32.totalorder %s144, %s145
      %p156 = scmp.eq.s32.totalorder %s32, 0
      %p157 = por %p155, %p156
      %p158 = scmp.ne.s32.totalorder %s144, %s145
      %p159 = scmp.eq.s32.totalorder %s33, 1
      %p160 = por %p158, %p159
      %p162 = scmp.ne.s32.totalorder %s145, %s161
      %p163 = scmp.eq.s32.totalorder %s33, 0
      %p164 = por %p162, %p163
      %s165 = ssub.s32 %s27, %s34
      %p166 = scmp.eq.s32.totalorder %s165, 0
      %s168 = sadd.s32 %s167, 1
      %s169 = scalar_select %p166, %s167, %s168
      %p172 = pneg %p166
      %p173 = scmp.eq.s32.totalorder %s27, 1
      %p174 = por %p172, %p173
      %p175 = scmp.ne.s32.totalorder %s167, %s170
      %p176 = scmp.eq.s32.totalorder %s27, 0
      %p177 = por %p175, %p176
      %p178 = scmp.ne.s32.totalorder %s167, %s170
      %p179 = scmp.eq.s32.totalorder %s32, 1
      %p180 = por %p178, %p179
      %p181 = scmp.ne.s32.totalorder %s170, %s171
      %p182 = scmp.eq.s32.totalorder %s32, 0
      %p183 = por %p181, %p182
      %p184 = scmp.ne.s32.totalorder %s170, %s171
      %p185 = scmp.eq.s32.totalorder %s33, 1
      %p186 = por %p184, %p185
      %p188 = scmp.ne.s32.totalorder %s171, %s187
      %p189 = scmp.eq.s32.totalorder %s33, 0
      %p190 = por %p188, %p189
      %p191 = scmp.le.s32.totalorder 1, %s27
      %p192 = scmp.lt.s32.totalorder %s27, 3
      %p193 = pnand %p191, %p192
      %p194 = pneg %p193
      // Predicated region
      $region9: #{tpu_custom_call.1} parent=5 // pred_check
        _
      $region10: #{tpu_custom_call.1} parent=5 // pred_check_branch
        %196 = sbr.rel (%p193) target = $region12
      $region11: #{tpu_custom_call.1} parent=5 // pred_region
        %s197 = ssub.s32 %s27, 1
      $region12: #{tpu_custom_call.1} parent=5 // pred_fallthru
        _
      %p198 = scmp.lt.s32.totalorder %s27, 2
      // Predicated region
      $region13: #{tpu_custom_call.1} parent=5 // pred_check
        %p199 = pneg %p198
      $region14: #{tpu_custom_call.1} parent=5 // pred_check_branch
        %201 = sbr.rel (%p199) target = $region16
      $region15: #{tpu_custom_call.1} parent=5 // pred_region
        // Predicated region
        $region17: #{tpu_custom_call.1} parent=15 // pred_check
          %p202 = pneg %p47
        $region18: #{tpu_custom_call.1} parent=15 // pred_check_branch
          %204 = sbr.rel (%p202) target = $region20
        $region19: #{tpu_custom_call.1} parent=15 // pred_region
          %s205 = sand.u32 %s37, 1
          %s206 = scalar_lea.sflag [#allocation3], %s205
          %s207 = sand.u32 %s37, 1
          %s208 = smul.addr %s207, 8
          %s209 = scalar_lea.vmem [#allocation2], %s208
          %211 = vsyncadd %s206, 0
          %s212 = smul.addr %s27, 8
          %s213 = scalar_lea.hbm %s0, %s212
          %s215 = sshll.u32 %s213, 4
          %s216 = int_to_ptr.hbm [resolvable:$true] %s215
          %s217 = sshll.u32 %s209, 4
          %s218 = int_to_ptr.vmem [resolvable:$true] %s217
          %220 = dma.hbm_to_vmem [thread:$0]  %s216, 128, %s218, %s206
        $region20: #{tpu_custom_call.1} parent=15 // pred_fallthru
          _
        // Predicated region
        $region21: #{tpu_custom_call.1} parent=15 // pred_check
          %p221 = pneg %p73
        $region22: #{tpu_custom_call.1} parent=15 // pred_check_branch
          %223 = sbr.rel (%p221) target = $region24
        $region23: #{tpu_custom_call.1} parent=15 // pred_region
          %s224 = sand.u32 %s27, 1
          %s225 = scalar_lea.sflag [#allocation6], %s224
          %s226 = sand.u32 %s63, 1
          %s227 = smul.addr %s226, 8
          %s228 = scalar_lea.vmem [#allocation5], %s227
          %230 = vsyncadd %s225, 0
          %s231 = smul.addr %s27, 8
          %s232 = scalar_lea.hbm %s1, %s231
          %s234 = sshll.u32 %s232, 4
          %s235 = int_to_ptr.hbm [resolvable:$true] %s234
          %s236 = sshll.u32 %s228, 4
          %s237 = int_to_ptr.vmem [resolvable:$true] %s236
          %239 = dma.hbm_to_vmem [thread:$0]  %s235, 128, %s237, %s225
        $region24: #{tpu_custom_call.1} parent=15 // pred_fallthru
          _
        // Predicated region
        $region25: #{tpu_custom_call.1} parent=15 // pred_check
          %p240 = pneg %p99
        $region26: #{tpu_custom_call.1} parent=15 // pred_check_branch
          %242 = sbr.rel (%p240) target = $region28
        $region27: #{tpu_custom_call.1} parent=15 // pred_region
          %s243 = sand.u32 %s27, 1
          %s244 = scalar_lea.sflag [#allocation6], %s243
          %s245 = sand.u32 %s89, 1
          %s246 = smul.addr %s245, 32
          %s247 = scalar_lea.vmem [#allocation7], %s246
          %s248 = smul.u32 8, %s27
          %250 = vsyncadd %s244, 0
          %s251 = smul.addr %s248, 4
          %s252 = scalar_lea.hbm %s2, %s251
          %s253 = sshll.u32 %s252, 4
          %s254 = int_to_ptr.hbm [resolvable:$true] %s253
          %s255 = sshll.u32 %s247, 4
          %s256 = int_to_ptr.vmem [resolvable:$true] %s255
          %261 = dma.hbm_to_vmem [thread:$0]  %s254, 512, %s256, %s244, 64, 64, 4
        $region28: #{tpu_custom_call.1} parent=15 // pred_fallthru
          _
        // Predicated region
        $region29: #{tpu_custom_call.1} parent=15 // pred_check
          %p262 = pneg %p125
        $region30: #{tpu_custom_call.1} parent=15 // pred_check_branch
          %264 = sbr.rel (%p262) target = $region32
        $region31: #{tpu_custom_call.1} parent=15 // pred_region
          %s265 = sand.u32 %s115, 1
          %s266 = scalar_lea.sflag [#allocation9], %s265
          %s267 = sand.u32 %s115, 1
          %s268 = smul.addr %s267, 16
          %s269 = scalar_lea.vmem [#allocation8], %s268
          %s270 = smul.u32 8, %s27
          %272 = vsyncadd %s266, 0
          %s273 = smul.addr %s270, 2
          %s274 = scalar_lea.hbm %s3, %s273
          %s275 = sshll.u32 %s274, 4
          %s276 = int_to_ptr.hbm [resolvable:$true] %s275
          %s277 = sshll.u32 %s269, 4
          %s278 = int_to_ptr.vmem [resolvable:$true] %s277
          %283 = dma.hbm_to_vmem [thread:$0]  %s276, 256, %s278, %s266, 32, 32, 2
        $region32: #{tpu_custom_call.1} parent=15 // pred_fallthru
          _
      $region16: #{tpu_custom_call.1} parent=5 // pred_fallthru
        _
      %p284 = scmp.le.s32.totalorder 1, %s27
      %p285 = scmp.lt.s32.totalorder %s27, 3
      %p286 = pnand %p284, %p285
      %p287 = pneg %p286
      // Predicated region
      $region33: #{tpu_custom_call.1} parent=5 // pred_check
        _
      $region34: #{tpu_custom_call.1} parent=5 // pred_check_branch
        %289 = sbr.rel (%p286) target = $region36
      $region35: #{tpu_custom_call.1} parent=5 // pred_region
        %s290 = ssub.s32 %s27, 1
        %s291 = sand.u32 %s40, 1
        %s292 = scalar_lea.sflag [#allocation3], %s291
        %s293 = sand.u32 %s40, 1
        %s294 = smul.addr %s293, 8
        %s295 = scalar_lea.vmem [#allocation2], %s294
        // Predicated region
        $region37: #{tpu_custom_call.1} parent=35 // pred_check
          %p296 = pneg %p53
        $region38: #{tpu_custom_call.1} parent=35 // pred_check_branch
          %298 = sbr.rel (%p296) target = $region40
        $region39: #{tpu_custom_call.1} parent=35 // pred_region
          %300 = dma.done %s292, 128
        $region40: #{tpu_custom_call.1} parent=35 // pred_fallthru
          _
        %s301 = sand.u32 %s32, 1
        %s302 = scalar_lea.sflag [#allocation6], %s301
        %s303 = sand.u32 %s66, 1
        %s304 = smul.addr %s303, 8
        %s305 = scalar_lea.vmem [#allocation5], %s304
        // Predicated region
        $region41: #{tpu_custom_call.1} parent=35 // pred_check
          %p306 = pneg %p79
        $region42: #{tpu_custom_call.1} parent=35 // pred_check_branch
          %308 = sbr.rel (%p306) target = $region44
        $region43: #{tpu_custom_call.1} parent=35 // pred_region
          %310 = dma.done %s302, 128
        $region44: #{tpu_custom_call.1} parent=35 // pred_fallthru
          _
        %s311 = sand.u32 %s32, 1
        %s312 = scalar_lea.sflag [#allocation6], %s311
        %s313 = sand.u32 %s92, 1
        %s314 = smul.addr %s313, 32
        %s315 = scalar_lea.vmem [#allocation7], %s314
        // Predicated region
        $region45: #{tpu_custom_call.1} parent=35 // pred_check
          %p316 = pneg %p105
        $region46: #{tpu_custom_call.1} parent=35 // pred_check_branch
          %318 = sbr.rel (%p316) target = $region48
        $region47: #{tpu_custom_call.1} parent=35 // pred_region
          %320 = dma.done %s312, 512
        $region48: #{tpu_custom_call.1} parent=35 // pred_fallthru
          _
        %s321 = sand.u32 %s118, 1
        %s322 = scalar_lea.sflag [#allocation9], %s321
        %s323 = sand.u32 %s118, 1
        %s324 = smul.addr %s323, 16
        %s325 = scalar_lea.vmem [#allocation8], %s324
        // Predicated region
        $region49: #{tpu_custom_call.1} parent=35 // pred_check
          %p326 = pneg %p131
        $region50: #{tpu_custom_call.1} parent=35 // pred_check_branch
          %328 = sbr.rel (%p326) target = $region52
        $region51: #{tpu_custom_call.1} parent=35 // pred_region
          %330 = dma.done %s322, 256
        $region52: #{tpu_custom_call.1} parent=35 // pred_fallthru
          _
        %s331 = sand.u32 %s40, 1
        %s332 = scalar_lea.sflag [#allocation3], %s331
        %s333 = sand.u32 %s40, 1
        %s334 = smul.addr %s333, 8
        %s335 = scalar_lea.vmem [#allocation2], %s334
        %p336 = pneg %p53
        %p337 = pneg %p50
        %s338 = sand.u32 %s32, 1
        %s339 = scalar_lea.sflag [#allocation6], %s338
        %s340 = sand.u32 %s66, 1
        %s341 = smul.addr %s340, 8
        %s342 = scalar_lea.vmem [#allocation5], %s341
        %p343 = pneg %p79
        %p344 = pneg %p76
        %s345 = sand.u32 %s32, 1
        %s346 = scalar_lea.sflag [#allocation6], %s345
        %s347 = sand.u32 %s92, 1
        %s348 = smul.addr %s347, 32
        %s349 = scalar_lea.vmem [#allocation7], %s348
        %p350 = pneg %p105
        %p351 = pneg %p102
        %s352 = sand.u32 %s118, 1
        %s353 = scalar_lea.sflag [#allocation9], %s352
        %s354 = sand.u32 %s118, 1
        %s355 = smul.addr %s354, 16
        %s356 = scalar_lea.vmem [#allocation8], %s355
        %p357 = pneg %p131
        %p358 = pneg %p128
        %p359 = pneg %p157
        %p360 = pneg %p154
        %s361 = sand.u32 %s144, 1
        %s362 = scalar_lea.sflag [#allocation4], %s361
        %s363 = sand.u32 %s144, 1
        %s364 = smul.addr %s363, 32
        %s365 = scalar_lea.vmem [#allocation10], %s364
        %p366 = pneg %p183
        %p367 = pneg %p180
        %s368 = sand.u32 %s170, 1
        %s369 = scalar_lea.sflag [#allocation12], %s368
        %s370 = sand.u32 %s170, 1
        %s371 = smul.addr %s370, 16
        %s372 = scalar_lea.vmem [#allocation11], %s371
        %s373 = smul.u32 8, %s32
        %s374 = smul.u32 8, %s32
        %s375 = smul.u32 8, %s32
        %s376 = smul.u32 8, %s32
        %v377 = vld [vmem:[%s295] sm:$0xff]
        %v379 = vrot.slane %v377, 1
        %v380 = vrot.slane %v377, 2
        %v381 = vrot.slane %v377, 3
        %v382 = vrot.slane %v377, 4
        %v383 = vrot.slane %v377, 5
        %v384 = vrot.slane %v377, 6
        %v385 = vrot.slane %v377, 7
        %v386 = vld [vmem:[%s305] sm:$0xff]
        %v388 = vrot.slane %v386, 1
        %v389 = vrot.slane %v386, 2
        %v390 = vrot.slane %v386, 3
        %v391 = vrot.slane %v386, 4
        %v392 = vrot.slane %v386, 5
        %v393 = vrot.slane %v386, 6
        %v394 = vrot.slane %v386, 7
        %v395 = vld [vmem:[%s315] sm:$0xf]
        %v396 = vld [vmem:[%s315 + $0x4] sm:$0xf]
        %v397 = vld [vmem:[%s315 + $0x8] sm:$0xf]
        %v398 = vld [vmem:[%s315 + $0xc] sm:$0xf]
        %v399 = vld [vmem:[%s315 + $0x10] sm:$0xf]
        %v400 = vld [vmem:[%s315 + $0x14] sm:$0xf]
        %v401 = vld [vmem:[%s315 + $0x18] sm:$0xf]
        %v402 = vld [vmem:[%s315 + $0x1c] sm:$0xf]
        %v403 = vperm.slane %v377, 0
        %v404 = vperm.slane %v379, 0
        %v405 = vperm.slane %v380, 0
        %v406 = vperm.slane %v381, 0
        %v407 = vperm.slane %v382, 0
        %v408 = vperm.slane %v383, 0
        %v409 = vperm.slane %v384, 0
        %v410 = vperm.slane %v385, 0
        %v419 = vmul.f32 %v395, %v403
        %v420 = vmul.f32 %v396, %v404
        %v421 = vmul.f32 %v397, %v405
        %v422 = vmul.f32 %v398, %v406
        %v423 = vmul.f32 %v399, %v407
        %v424 = vmul.f32 %v400, %v408
        %v425 = vmul.f32 %v401, %v409
        %v426 = vmul.f32 %v402, %v410
        %v427 = vperm.slane %v386, 0
        %v428 = vperm.slane %v388, 0
        %v429 = vperm.slane %v389, 0
        %v430 = vperm.slane %v390, 0
        %v431 = vperm.slane %v391, 0
        %v432 = vperm.slane %v392, 0
        %v433 = vperm.slane %v393, 0
        %v434 = vperm.slane %v394, 0
        %443 = vrot.lane.b32.xlu0 %v427, 16
        %v444 = vpop.permute.xlu0 %443
        %445 = vrot.lane.b32.xlu0 %v428, 16
        %v446 = vpop.permute.xlu0 %445
        %447 = vrot.lane.b32.xlu0 %v429, 16
        %v448 = vpop.permute.xlu0 %447
        %449 = vrot.lane.b32.xlu0 %v430, 16
        %v450 = vpop.permute.xlu0 %449
        %451 = vrot.lane.b32.xlu0 %v431, 16
        %v452 = vpop.permute.xlu0 %451
        %453 = vrot.lane.b32.xlu0 %v432, 16
        %v454 = vpop.permute.xlu0 %453
        %455 = vrot.lane.b32.xlu0 %v433, 16
        %v456 = vpop.permute.xlu0 %455
        %457 = vrot.lane.b32.xlu0 %v434, 16
        %v458 = vpop.permute.xlu0 %457
        %v467 = vmul.f32 %v395, %v444
        %v468 = vmul.f32 %v396, %v446
        %v469 = vmul.f32 %v397, %v448
        %v470 = vmul.f32 %v398, %v450
        %v471 = vmul.f32 %v399, %v452
        %v472 = vmul.f32 %v400, %v454
        %v473 = vmul.f32 %v401, %v456
        %v474 = vmul.f32 %v402, %v458
        %483 = vrot.lane.b32.xlu0 %v467, 112
        %v484 = vpop.permute.xlu0 %483
        %485 = vrot.lane.b32.xlu0 %v468, 112
        %v486 = vpop.permute.xlu0 %485
        %487 = vrot.lane.b32.xlu0 %v469, 112
        %v488 = vpop.permute.xlu0 %487
        %489 = vrot.lane.b32.xlu0 %v470, 112
        %v490 = vpop.permute.xlu0 %489
        %491 = vrot.lane.b32.xlu0 %v471, 112
        %v492 = vpop.permute.xlu0 %491
        %493 = vrot.lane.b32.xlu0 %v472, 112
        %v494 = vpop.permute.xlu0 %493
        %495 = vrot.lane.b32.xlu0 %v473, 112
        %v496 = vpop.permute.xlu0 %495
        %497 = vrot.lane.b32.xlu0 %v474, 112
        %v498 = vpop.permute.xlu0 %497
        %v507 = vsub.f32 %v419, %v484
        %v508 = vsub.f32 %v420, %v486
        %v509 = vsub.f32 %v421, %v488
        %v510 = vsub.f32 %v422, %v490
        %v511 = vsub.f32 %v423, %v492
        %v512 = vsub.f32 %v424, %v494
        %v513 = vsub.f32 %v425, %v496
        %v514 = vsub.f32 %v426, %v498
        %vm515 = vcmask 125952
        %516 = vst.msk [vmem:[%s365] sm:$0xf] %vm515, %v507
        %517 = vst.msk [vmem:[%s365 + $0x4] sm:$0xf] %vm515, %v508
        %518 = vst.msk [vmem:[%s365 + $0x8] sm:$0xf] %vm515, %v509
        %519 = vst.msk [vmem:[%s365 + $0xc] sm:$0xf] %vm515, %v510
        %520 = vst.msk [vmem:[%s365 + $0x10] sm:$0xf] %vm515, %v511
        %521 = vst.msk [vmem:[%s365 + $0x14] sm:$0xf] %vm515, %v512
        %522 = vst.msk [vmem:[%s365 + $0x18] sm:$0xf] %vm515, %v513
        %523 = vst.msk [vmem:[%s365 + $0x1c] sm:$0xf] %vm515, %v514
        %524 = vrot.lane.b32.xlu0 %v403, 16
        %v525 = vpop.permute.xlu0 %524
        %526 = vrot.lane.b32.xlu0 %v404, 16
        %v527 = vpop.permute.xlu0 %526
        %528 = vrot.lane.b32.xlu0 %v405, 16
        %v529 = vpop.permute.xlu0 %528
        %530 = vrot.lane.b32.xlu0 %v406, 16
        %v531 = vpop.permute.xlu0 %530
        %532 = vrot.lane.b32.xlu0 %v407, 16
        %v533 = vpop.permute.xlu0 %532
        %534 = vrot.lane.b32.xlu0 %v408, 16
        %v535 = vpop.permute.xlu0 %534
        %536 = vrot.lane.b32.xlu0 %v409, 16
        %v537 = vpop.permute.xlu0 %536
        %538 = vrot.lane.b32.xlu0 %v410, 16
        %v539 = vpop.permute.xlu0 %538
        %v548 = vmul.f32 %v395, %v525
        %v549 = vmul.f32 %v396, %v527
        %v550 = vmul.f32 %v397, %v529
        %v551 = vmul.f32 %v398, %v531
        %v552 = vmul.f32 %v399, %v533
        %v553 = vmul.f32 %v400, %v535
        %v554 = vmul.f32 %v401, %v537
        %v555 = vmul.f32 %v402, %v539
        %v556 = vmul.f32 %v395, %v427
        %v557 = vmul.f32 %v396, %v428
        %v558 = vmul.f32 %v397, %v429
        %v559 = vmul.f32 %v398, %v430
        %v560 = vmul.f32 %v399, %v431
        %v561 = vmul.f32 %v400, %v432
        %v562 = vmul.f32 %v401, %v433
        %v563 = vmul.f32 %v402, %v434
        %572 = vrot.lane.b32.xlu0 %v556, 16
        %v573 = vpop.permute.xlu0 %572
        %574 = vrot.lane.b32.xlu0 %v557, 16
        %v575 = vpop.permute.xlu0 %574
        %576 = vrot.lane.b32.xlu0 %v558, 16
        %v577 = vpop.permute.xlu0 %576
        %578 = vrot.lane.b32.xlu0 %v559, 16
        %v579 = vpop.permute.xlu0 %578
        %580 = vrot.lane.b32.xlu0 %v560, 16
        %v581 = vpop.permute.xlu0 %580
        %582 = vrot.lane.b32.xlu0 %v561, 16
        %v583 = vpop.permute.xlu0 %582
        %584 = vrot.lane.b32.xlu0 %v562, 16
        %v585 = vpop.permute.xlu0 %584
        %586 = vrot.lane.b32.xlu0 %v563, 16
        %v587 = vpop.permute.xlu0 %586
        %v596 = vadd.f32 %v548, %v573
        %v597 = vadd.f32 %v549, %v575
        %v598 = vadd.f32 %v550, %v577
        %v599 = vadd.f32 %v551, %v579
        %v600 = vadd.f32 %v552, %v581
        %v601 = vadd.f32 %v553, %v583
        %v602 = vadd.f32 %v554, %v585
        %v603 = vadd.f32 %v555, %v587
        %vm604 = vcmask 257152
        %605 = vst.msk [vmem:[%s365] sm:$0xf] %vm604, %v596
        %606 = vst.msk [vmem:[%s365 + $0x4] sm:$0xf] %vm604, %v597
        %607 = vst.msk [vmem:[%s365 + $0x8] sm:$0xf] %vm604, %v598
        %608 = vst.msk [vmem:[%s365 + $0xc] sm:$0xf] %vm604, %v599
        %609 = vst.msk [vmem:[%s365 + $0x10] sm:$0xf] %vm604, %v600
        %610 = vst.msk [vmem:[%s365 + $0x14] sm:$0xf] %vm604, %v601
        %611 = vst.msk [vmem:[%s365 + $0x18] sm:$0xf] %vm604, %v602
        %612 = vst.msk [vmem:[%s365 + $0x1c] sm:$0xf] %vm604, %v603
        %v613 = vld [vmem:[%s325] sm:$0x3]
        %v614 = vld [vmem:[%s325 + $0x2] sm:$0x3]
        %v615 = vld [vmem:[%s325 + $0x4] sm:$0x3]
        %v616 = vld [vmem:[%s325 + $0x6] sm:$0x3]
        %v617 = vld [vmem:[%s325 + $0x8] sm:$0x3]
        %v618 = vld [vmem:[%s325 + $0xa] sm:$0x3]
        %v619 = vld [vmem:[%s325 + $0xc] sm:$0x3]
        %v620 = vld [vmem:[%s325 + $0xe] sm:$0x3]
        %v621 = vmul.f32 %v613, %v403
        %v622 = vmul.f32 %v614, %v404
        %v623 = vmul.f32 %v615, %v405
        %v624 = vmul.f32 %v616, %v406
        %v625 = vmul.f32 %v617, %v407
        %v626 = vmul.f32 %v618, %v408
        %v627 = vmul.f32 %v619, %v409
        %v628 = vmul.f32 %v620, %v410
        %v629 = vmul.f32 %v613, %v444
        %v630 = vmul.f32 %v614, %v446
        %v631 = vmul.f32 %v615, %v448
        %v632 = vmul.f32 %v616, %v450
        %v633 = vmul.f32 %v617, %v452
        %v634 = vmul.f32 %v618, %v454
        %v635 = vmul.f32 %v619, %v456
        %v636 = vmul.f32 %v620, %v458
        %645 = vrot.lane.b32.xlu0 %v629, 112
        %v646 = vpop.permute.xlu0 %645
        %647 = vrot.lane.b32.xlu0 %v630, 112
        %v648 = vpop.permute.xlu0 %647
        %649 = vrot.lane.b32.xlu0 %v631, 112
        %v650 = vpop.permute.xlu0 %649
        %651 = vrot.lane.b32.xlu0 %v632, 112
        %v652 = vpop.permute.xlu0 %651
        %653 = vrot.lane.b32.xlu0 %v633, 112
        %v654 = vpop.permute.xlu0 %653
        %655 = vrot.lane.b32.xlu0 %v634, 112
        %v656 = vpop.permute.xlu0 %655
        %657 = vrot.lane.b32.xlu0 %v635, 112
        %v658 = vpop.permute.xlu0 %657
        %659 = vrot.lane.b32.xlu0 %v636, 112
        %v660 = vpop.permute.xlu0 %659
        %v669 = vsub.f32 %v621, %v646
        %v670 = vsub.f32 %v622, %v648
        %v671 = vsub.f32 %v623, %v650
        %v672 = vsub.f32 %v624, %v652
        %v673 = vsub.f32 %v625, %v654
        %v674 = vsub.f32 %v626, %v656
        %v675 = vsub.f32 %v627, %v658
        %v676 = vsub.f32 %v628, %v660
        %vm677 = vcmask 123904
        %678 = vst.msk [vmem:[%s372] sm:$0x3] %vm677, %v669
        %679 = vst.msk [vmem:[%s372 + $0x2] sm:$0x3] %vm677, %v670
        %680 = vst.msk [vmem:[%s372 + $0x4] sm:$0x3] %vm677, %v671
        %681 = vst.msk [vmem:[%s372 + $0x6] sm:$0x3] %vm677, %v672
        %682 = vst.msk [vmem:[%s372 + $0x8] sm:$0x3] %vm677, %v673
        %683 = vst.msk [vmem:[%s372 + $0xa] sm:$0x3] %vm677, %v674
        %684 = vst.msk [vmem:[%s372 + $0xc] sm:$0x3] %vm677, %v675
        %685 = vst.msk [vmem:[%s372 + $0xe] sm:$0x3] %vm677, %v676
        %v686 = vmul.f32 %v613, %v525
        %v687 = vmul.f32 %v614, %v527
        %v688 = vmul.f32 %v615, %v529
        %v689 = vmul.f32 %v616, %v531
        %v690 = vmul.f32 %v617, %v533
        %v691 = vmul.f32 %v618, %v535
        %v692 = vmul.f32 %v619, %v537
        %v693 = vmul.f32 %v620, %v539
        %v694 = vmul.f32 %v613, %v427
        %v695 = vmul.f32 %v614, %v428
        %v696 = vmul.f32 %v615, %v429
        %v697 = vmul.f32 %v616, %v430
        %v698 = vmul.f32 %v617, %v431
        %v699 = vmul.f32 %v618, %v432
        %v700 = vmul.f32 %v619, %v433
        %v701 = vmul.f32 %v620, %v434
        %710 = vrot.lane.b32.xlu0 %v694, 16
        %v711 = vpop.permute.xlu0 %710
        %712 = vrot.lane.b32.xlu0 %v695, 16
        %v713 = vpop.permute.xlu0 %712
        %714 = vrot.lane.b32.xlu0 %v696, 16
        %v715 = vpop.permute.xlu0 %714
        %716 = vrot.lane.b32.xlu0 %v697, 16
        %v717 = vpop.permute.xlu0 %716
        %718 = vrot.lane.b32.xlu0 %v698, 16
        %v719 = vpop.permute.xlu0 %718
        %720 = vrot.lane.b32.xlu0 %v699, 16
        %v721 = vpop.permute.xlu0 %720
        %722 = vrot.lane.b32.xlu0 %v700, 16
        %v723 = vpop.permute.xlu0 %722
        %724 = vrot.lane.b32.xlu0 %v701, 16
        %v725 = vpop.permute.xlu0 %724
        %v734 = vadd.f32 %v686, %v711
        %v735 = vadd.f32 %v687, %v713
        %v736 = vadd.f32 %v688, %v715
        %v737 = vadd.f32 %v689, %v717
        %v738 = vadd.f32 %v690, %v719
        %v739 = vadd.f32 %v691, %v721
        %v740 = vadd.f32 %v692, %v723
        %v741 = vadd.f32 %v693, %v725
        %vm742 = vcmask 255104
        %743 = vst.msk [vmem:[%s372] sm:$0x3] %vm742, %v734
        %744 = vst.msk [vmem:[%s372 + $0x2] sm:$0x3] %vm742, %v735
        %745 = vst.msk [vmem:[%s372 + $0x4] sm:$0x3] %vm742, %v736
        %746 = vst.msk [vmem:[%s372 + $0x6] sm:$0x3] %vm742, %v737
        %747 = vst.msk [vmem:[%s372 + $0x8] sm:$0x3] %vm742, %v738
        %748 = vst.msk [vmem:[%s372 + $0xa] sm:$0x3] %vm742, %v739
        %749 = vst.msk [vmem:[%s372 + $0xc] sm:$0x3] %vm742, %v740
        %750 = vst.msk [vmem:[%s372 + $0xe] sm:$0x3] %vm742, %v741
        %s751 = sand.u32 %s144, 1
        %s752 = scalar_lea.sflag [#allocation4], %s751
        %s753 = sand.u32 %s144, 1
        %s754 = smul.addr %s753, 32
        %s755 = scalar_lea.vmem [#allocation10], %s754
        %s756 = sand.u32 %s170, 1
        %s757 = scalar_lea.sflag [#allocation12], %s756
        %s758 = sand.u32 %s170, 1
        %s759 = smul.addr %s758, 16
        %s760 = scalar_lea.vmem [#allocation11], %s759
        // Predicated region
        $region53: #{tpu_custom_call.1} parent=35 // pred_check
          %p761 = pneg %p154
        $region54: #{tpu_custom_call.1} parent=35 // pred_check_branch
          %763 = sbr.rel (%p761) target = $region56
        $region55: #{tpu_custom_call.1} parent=35 // pred_region
          %s764 = smul.u32 8, %s32
          %766 = vsyncadd %s752, 0
          %s767 = smul.addr %s764, 4
          %s768 = scalar_lea.hbm %s4, %s767
          %s769 = sshll.u32 %s755, 4
          %s770 = int_to_ptr.vmem [resolvable:$true] %s769
          %s771 = sshll.u32 %s768, 4
          %s772 = int_to_ptr.hbm [resolvable:$true] %s771
          %777 = dma.vmem_to_hbm [thread:$0]  %s770, 512, %s772, %s752, 64, 64, 4
        $region56: #{tpu_custom_call.1} parent=35 // pred_fallthru
          _
        // Predicated region
        $region57: #{tpu_custom_call.1} parent=35 // pred_check
          %p778 = pneg %p180
        $region58: #{tpu_custom_call.1} parent=35 // pred_check_branch
          %780 = sbr.rel (%p778) target = $region60
        $region59: #{tpu_custom_call.1} parent=35 // pred_region
          %s781 = smul.u32 8, %s32
          %783 = vsyncadd %s757, 0
          %s784 = smul.addr %s781, 2
          %s785 = scalar_lea.hbm %s5, %s784
          %s786 = sshll.u32 %s760, 4
          %s787 = int_to_ptr.vmem [resolvable:$true] %s786
          %s788 = sshll.u32 %s785, 4
          %s789 = int_to_ptr.hbm [resolvable:$true] %s788
          %794 = dma.vmem_to_hbm [thread:$0]  %s787, 256, %s789, %s757, 32, 32, 2
        $region60: #{tpu_custom_call.1} parent=35 // pred_fallthru
          _
      $region36: #{tpu_custom_call.1} parent=5 // pred_fallthru
        _
      %p795 = scmp.le.s32.totalorder 2, %s27
      // Predicated region
      $region61: #{tpu_custom_call.1} parent=5 // pred_check
        %p796 = pneg %p795
      $region62: #{tpu_custom_call.1} parent=5 // pred_check_branch
        %798 = sbr.rel (%p796) target = $region64
      $region63: #{tpu_custom_call.1} parent=5 // pred_region
        %s799 = ssub.s32 %s27, 2
        // Predicated region
        $region65: #{tpu_custom_call.1} parent=63 // pred_check
          %p800 = pneg %p160
        $region66: #{tpu_custom_call.1} parent=63 // pred_check_branch
          %802 = sbr.rel (%p800) target = $region68
        $region67: #{tpu_custom_call.1} parent=63 // pred_region
          %s803 = sand.u32 %s145, 1
          %s804 = scalar_lea.sflag [#allocation4], %s803
          %s805 = sand.u32 %s145, 1
          %s806 = smul.addr %s805, 32
          %s807 = scalar_lea.vmem [#allocation10], %s806
          %809 = dma.done %s804, 512
        $region68: #{tpu_custom_call.1} parent=63 // pred_fallthru
          _
        // Predicated region
        $region69: #{tpu_custom_call.1} parent=63 // pred_check
          %p810 = pneg %p186
        $region70: #{tpu_custom_call.1} parent=63 // pred_check_branch
          %812 = sbr.rel (%p810) target = $region72
        $region71: #{tpu_custom_call.1} parent=63 // pred_region
          %s813 = sand.u32 %s171, 1
          %s814 = scalar_lea.sflag [#allocation12], %s813
          %s815 = sand.u32 %s171, 1
          %s816 = smul.addr %s815, 16
          %s817 = scalar_lea.vmem [#allocation11], %s816
          %819 = dma.done %s814, 256
        $region72: #{tpu_custom_call.1} parent=63 // pred_fallthru
          _
      $region64: #{tpu_custom_call.1} parent=5 // pred_fallthru
        _
    $region6: #{tpu_custom_call.1} parent=1 // loop_footer
      %s31 = sadd.s32 1, %s27
    $region7: #{tpu_custom_call.1} parent=1 // loop_footer_branch
      %26 = sbr.rel target = $region3
    $region8: #{tpu_custom_call.1} parent=1 // loop_exit
      _
    %820 = vsyncpa [#allocation3], 1
    %s821 = scalar_lea.sflag [#allocation3], 1
    %822 = vsyncpa %s821, 1
    %823 = vsyncpa [#allocation6], 1
    %s824 = scalar_lea.sflag [#allocation6], 1
    %825 = vsyncpa %s824, 1
    %826 = vsyncpa [#allocation9], 1
    %s827 = scalar_lea.sflag [#allocation9], 1
    %828 = vsyncpa %s827, 1
    %829 = vsyncpa [#allocation4], 1
    %s830 = scalar_lea.sflag [#allocation4], 1
    %831 = vsyncpa %s830, 1
    %832 = vsyncpa [#allocation12], 1
    %s833 = scalar_lea.sflag [#allocation12], 1
    %834 = vsyncpa %s833, 1

</llo_original>
